<compile_context>
chip_gen: v5e
topology: v5e:2x2
jax: 0.10.0
libtpu: 0.0.40
codegen_flags: <defaults>
</compile_context>

<pallas_src>
import jax
import jax.numpy as jnp
import numpy as np
from jax import lax
from jax.experimental import pallas as pl
from jax.experimental.pallas import tpu as pltpu

_BN_EPS = 1e-5


def _residual_block_kernel(x_ref, wt1_ref, wt2_ref, bn_ref, o_ref, pad_scr):
    """Whole residual block in one invocation (toy shape fits VMEM).

    x_ref   : (N, H, W*C)          f32   lane-dense input (also the shortcut)
    wt1_ref : (3, (W+2)*C, W*C)    bf16  conv1 row-Toeplitz weights (per dy)
    wt2_ref : (3, (W+2)*C, W*C)    bf16  conv2 row-Toeplitz weights (per dy)
    bn_ref  : (4, W*C)             f32   lane-tiled [gamma1, beta1, gamma2, beta2]
    o_ref   : (N*H, W*C)           f32   lane-dense output
    pad_scr : (N, H+2, (W+2)*C)    bf16  zero-ringed conv-input scratch (reused)
    """
    N, H, WC = x_ref.shape
    WCp = pad_scr.shape[-1]
    C = (WCp - WC) // 2            # Cin == Cout (identity shortcut)
    W = WC // C
    M = N * H
    inv_cnt = 1.0 / (M * W)        # BN count per channel = N*H*W

    # 0/1 channel-group matrix: one tiny f32 dot does the per-channel reduce
    # over the W lane groups and broadcasts the result back to every lane of
    # that channel — no lane reshapes / tiles on the activation path.
    gi = lax.broadcasted_iota(jnp.int32, (WC, WC), 0)
    gj = lax.broadcasted_iota(jnp.int32, (WC, WC), 1)
    G = (gi % C == gj % C).astype(jnp.float32)

    def conv3x3(wt_ref):
        # 3 lane-dense MXU dots (one per dy); dx shifts + channel contraction
        # are folded into the banded Toeplitz weight. f32 accumulation.
        acc = jnp.zeros((M, WC), jnp.float32)
        for dy in range(3):
            tap = pad_scr[:, dy:dy + H, :].reshape(M, WCp)   # bf16, sublane shift
            acc = acc + jnp.dot(tap, wt_ref[dy],
                                preferred_element_type=jnp.float32)
        return acc                                           # (M, W*C) f32

    def batchnorm(h, gamma_row, beta_row):
        # one-pass training-mode stats (sum & sumsq, biased var), all in f32
        s = jnp.sum(h, axis=0, keepdims=True)                # (1, W*C)
        sq = jnp.sum(h * h, axis=0, keepdims=True)           # (1, W*C)
        stats = jnp.dot(jnp.concatenate([s, sq], axis=0), G,
                        preferred_element_type=jnp.float32) * inv_cnt
        mean = stats[0:1, :]
        var = stats[1:2, :] - mean * mean
        scale = bn_ref[gamma_row:gamma_row + 1, :] * lax.rsqrt(var + _BN_EPS)
        return (h - mean) * scale + bn_ref[beta_row:beta_row + 1, :]

    # ---- zero the scratch once (single full store; the 1-pixel halo ring
    #      stays zero across both interior rewrites) ----
    pad_scr[...] = jnp.zeros_like(pad_scr)

    # ---- conv1 (bias omitted: exactly cancelled by training-mode BN mean) ----
    pad_scr[:, 1:H + 1, C:C + WC] = x_ref[...].astype(pad_scr.dtype)
    h = conv3x3(wt1_ref)
    h = jnp.maximum(batchnorm(h, 0, 1), 0.0)                 # bn1 + ReLU

    # ---- conv2 (reuse the same scratch; ring still zero) ----
    pad_scr[:, 1:H + 1, C:C + WC] = h.reshape(N, H, WC).astype(pad_scr.dtype)
    h2 = batchnorm(conv3x3(wt2_ref), 2, 3)                   # bn2

    # ---- residual add (shortcut re-read lane-dense from x_ref) + ReLU ----
    o_ref[...] = jnp.maximum(h2 + x_ref[...].reshape(M, WC), 0.0
                             ).astype(o_ref.dtype)


def _conv3x3_row_toeplitz(w_oihw, width):
    """OIHW 3x3 weights -> 3 banded matrices ((W+2)*Cin, W*Cout), one per dy.

    Wt[dy][(x+dx)*Cin + ci, x*Cout + co] = w[co, ci, dy, dx]; all else zero.
    Folding the dx shift and channel contraction into the weight keeps the
    conv's MXU operands lane-dense even for small channel counts.
    """
    Cout, Cin = w_oihw.shape[0], w_oihw.shape[1]
    rows = []
    for dy in range(3):
        acc = jnp.zeros(((width + 2) * Cin, width * Cout), jnp.float32)
        for dx in range(3):
            band = jnp.asarray(np.eye(width + 2, width, k=-dx), jnp.float32)
            acc = acc + jnp.kron(band, w_oihw[:, :, dy, dx].T)
        rows.append(acc)
    return jnp.stack(rows, axis=0)                # (3, (W+2)*Cin, W*Cout)


def residual_block_forward(x_nchw, params, *, stride=1, down_sample=False):
    """Pallas version of ResidualBlock.forward (identity-shortcut case)."""
    if stride != 1 or down_sample:
        # TODO(synk): stride>1 / down_sample shortcut (channel zero-pad + MaxPool2d)
        # path is not lowered to Pallas in this synthetic kernel.
        raise NotImplementedError("only stride=1, down_sample=False is implemented")

    N, Cin, H, W = x_nchw.shape
    Cout = params["w1"].shape[0]
    assert Cin == Cout, "identity shortcut requires in_channels == out_channels"

    # NCHW -> (N, H, W*C): channels folded onto the lane axis (lane-dense).
    x_lane = jnp.transpose(x_nchw, (0, 2, 3, 1)).reshape(N, H, W * Cin)
    x_lane = x_lane.astype(jnp.float32)

    # Row-Toeplitz conv weights, bf16 MXU operands (f32 accumulation in-kernel).
    wt1 = _conv3x3_row_toeplitz(params["w1"], W).astype(jnp.bfloat16)
    wt2 = _conv3x3_row_toeplitz(params["w2"], W).astype(jnp.bfloat16)

    # Lane-tiled BN affine params: row r, lane x*C+c holds the channel-c value.
    bn = jnp.stack([jnp.tile(params["bn1_gamma"], W),
                    jnp.tile(params["bn1_beta"], W),
                    jnp.tile(params["bn2_gamma"], W),
                    jnp.tile(params["bn2_beta"], W)], axis=0).astype(jnp.float32)

    vmem = pl.BlockSpec(memory_space=pltpu.MemorySpace.VMEM)
    out_flat = pl.pallas_call(
        _residual_block_kernel,
        out_shape=jax.ShapeDtypeStruct((N * H, W * Cout), jnp.float32),
        in_specs=[vmem, vmem, vmem, vmem],
        out_specs=vmem,
        scratch_shapes=[pltpu.VMEM((N, H + 2, (W + 2) * Cin), jnp.bfloat16)],
        compiler_params=pltpu.CompilerParams(vmem_limit_bytes=32 * 1024 * 1024),
    )(x_lane, wt1, wt2, bn)

    # (N*H, W*C) -> (N, H, W, C) -> NCHW
    return jnp.transpose(out_flat.reshape(N, H, W, Cout), (0, 3, 1, 2))


def residual_block_reference(x, p):
    """Pure-JAX f32 reference (mirrors the PyTorch forward in NCHW, with biases)."""
    dn = ("NCHW", "OIHW", "NCHW")

    def bn(y, gamma, beta):
        mu = y.mean(axis=(0, 2, 3), keepdims=True)
        var = ((y - mu) ** 2).mean(axis=(0, 2, 3), keepdims=True)
        return ((y - mu) / jnp.sqrt(var + _BN_EPS)
                * gamma[None, :, None, None] + beta[None, :, None, None])

    y = lax.conv_general_dilated(x, p["w1"], (1, 1), "SAME", dimension_numbers=dn,
                                 precision=lax.Precision.HIGHEST)
    y = y + p["b1"][None, :, None, None]
    y = jnp.maximum(bn(y, p["bn1_gamma"], p["bn1_beta"]), 0.0)
    z = lax.conv_general_dilated(y, p["w2"], (1, 1), "SAME", dimension_numbers=dn,
                                 precision=lax.Precision.HIGHEST)
    z = z + p["b2"][None, :, None, None]
    z = bn(z, p["bn2_gamma"], p["bn2_beta"])
    return jnp.maximum(z + x, 0.0)


if __name__ == "__main__":
    N, C, H, W = 2, 4, 16, 16  # in_channels == out_channels, stride=1, down_sample=False

    key = jax.random.PRNGKey(0)
    k_x, k_w1, k_b1, k_w2, k_b2 = jax.random.split(key, 5)

    x = jax.random.normal(k_x, (N, C, H, W), dtype=jnp.float32)
    params = {
        "w1": 0.1 * jax.random.normal(k_w1, (C, C, 3, 3), dtype=jnp.float32),   # OIHW
        "b1": 0.1 * jax.random.normal(k_b1, (C,), dtype=jnp.float32),
        "bn1_gamma": jnp.ones((C,), jnp.float32),
        "bn1_beta": jnp.zeros((C,), jnp.float32),
        "w2": 0.1 * jax.random.normal(k_w2, (C, C, 3, 3), dtype=jnp.float32),   # OIHW
        "b2": 0.1 * jax.random.normal(k_b2, (C,), dtype=jnp.float32),
        "bn2_gamma": jnp.ones((C,), jnp.float32),
        "bn2_beta": jnp.zeros((C,), jnp.float32),
    }

    out = jax.block_until_ready(residual_block_forward(x, params))
    ref = jax.block_until_ready(residual_block_reference(x, params))

    assert out.shape == (N, C, H, W) and out.dtype == jnp.float32
    # Tolerance sized for bf16 MXU operands (f32 accumulation / f32 BN stats)
    # vs the f32 HIGHEST-precision reference, amplified by two BatchNorms.
    np.testing.assert_allclose(np.asarray(out), np.asarray(ref), rtol=2e-2, atol=5e-2)

    print("KERNEL_OK")
</pallas_src>

<mosaic_0001>
module attributes {stable_mosaic.version = 11 : i64} {
  func.func @_residual_block_kernel(%arg0: memref<2x16x64xf32, #tpu.memory_space<vmem>>, %arg1: memref<3x72x64xbf16, #tpu.memory_space<vmem>>, %arg2: memref<3x72x64xbf16, #tpu.memory_space<vmem>>, %arg3: memref<4x64xf32, #tpu.memory_space<vmem>>, %arg4: memref<32x64xf32, #tpu.memory_space<vmem>>, %arg5: memref<2x18x72xbf16, #tpu.memory_space<vmem>>) attributes {dimension_semantics = [], scalar_prefetch = 0 : i64, scratch_operands = 1 : i64, tpu.core_type = #tpu.core_type<tc>} {
    %0 = tpu.iota {dimensions = array<i32: 0>} : vector<64x64xi32>
    %1 = tpu.iota {dimensions = array<i32: 1>} : vector<64x64xi32>
    %c4_i32 = arith.constant 4 : i32
    %c0_i32 = arith.constant 0 : i32
    %2 = arith.cmpi eq, %c4_i32, %c0_i32 : i32
    %c1_i32 = arith.constant 1 : i32
    %3 = arith.select %2, %c1_i32, %c4_i32 : i32
    %4 = vector.broadcast %3 : i32 to vector<64x64xi32>
    %5 = arith.remsi %0, %4 : vector<64x64xi32>
    %c0_i32_0 = arith.constant 0 : i32
    %6 = vector.broadcast %c0_i32_0 : i32 to vector<64x64xi32>
    %7 = arith.cmpi ne, %5, %6 : vector<64x64xi32>
    %c0_i32_1 = arith.constant 0 : i32
    %8 = vector.broadcast %c0_i32_1 : i32 to vector<64x64xi32>
    %9 = arith.cmpi slt, %5, %8 : vector<64x64xi32>
    %c0_i32_2 = arith.constant 0 : i32
    %10 = arith.cmpi slt, %3, %c0_i32_2 : i32
    %11 = vector.broadcast %10 : i1 to vector<64x64xi1>
    %12 = vector.broadcast %11 : vector<64x64xi1> to vector<64x64xi1>
    %13 = arith.xori %9, %12 : vector<64x64xi1>
    %14 = arith.andi %13, %7 : vector<64x64xi1>
    %15 = vector.broadcast %3 : i32 to vector<64x64xi32>
    %16 = arith.addi %5, %15 : vector<64x64xi32>
    %17 = arith.select %14, %16, %5 : vector<64x64xi1>, vector<64x64xi32>
    %c4_i32_3 = arith.constant 4 : i32
    %c0_i32_4 = arith.constant 0 : i32
    %18 = arith.cmpi eq, %c4_i32_3, %c0_i32_4 : i32
    %c1_i32_5 = arith.constant 1 : i32
    %19 = arith.select %18, %c1_i32_5, %c4_i32_3 : i32
    %20 = vector.broadcast %19 : i32 to vector<64x64xi32>
    %21 = arith.remsi %1, %20 : vector<64x64xi32>
    %c0_i32_6 = arith.constant 0 : i32
    %22 = vector.broadcast %c0_i32_6 : i32 to vector<64x64xi32>
    %23 = arith.cmpi ne, %21, %22 : vector<64x64xi32>
    %c0_i32_7 = arith.constant 0 : i32
    %24 = vector.broadcast %c0_i32_7 : i32 to vector<64x64xi32>
    %25 = arith.cmpi slt, %21, %24 : vector<64x64xi32>
    %c0_i32_8 = arith.constant 0 : i32
    %26 = arith.cmpi slt, %19, %c0_i32_8 : i32
    %27 = vector.broadcast %26 : i1 to vector<64x64xi1>
    %28 = vector.broadcast %27 : vector<64x64xi1> to vector<64x64xi1>
    %29 = arith.xori %25, %28 : vector<64x64xi1>
    %30 = arith.andi %29, %23 : vector<64x64xi1>
    %31 = vector.broadcast %19 : i32 to vector<64x64xi32>
    %32 = arith.addi %21, %31 : vector<64x64xi32>
    %33 = arith.select %30, %32, %21 : vector<64x64xi1>, vector<64x64xi32>
    %34 = arith.cmpi eq, %17, %33 : vector<64x64xi32>
    %35 = arith.extui %34 : vector<64x64xi1> to vector<64x64xi32>
    %36 = arith.sitofp %35 : vector<64x64xi32> to vector<64x64xf32>
    %cst = arith.constant 0.000000e+00 : bf16
    %37 = vector.broadcast %cst : bf16 to vector<2x18x72xbf16>
    %c0 = arith.constant 0 : index
    %c0_9 = arith.constant 0 : index
    %c0_10 = arith.constant 0 : index
    %38 = vector.load %arg5[%c0, %c0_9, %c0_10] : memref<2x18x72xbf16, #tpu.memory_space<vmem>>, vector<2x18x72xbf16>
    tpu.vector_store %arg5[%c0, %c0_9, %c0_10], %37 {strides = array<i32>} : memref<2x18x72xbf16, #tpu.memory_space<vmem>>, vector<2x18x72xbf16>,
    %c0_11 = arith.constant 0 : index
    %c0_12 = arith.constant 0 : index
    %c0_13 = arith.constant 0 : index
    %39 = vector.load %arg0[%c0_11, %c0_12, %c0_13] : memref<2x16x64xf32, #tpu.memory_space<vmem>>, vector<2x16x64xf32>
    %40 = arith.truncf %39 : vector<2x16x64xf32> to vector<2x16x64xbf16>
    %c0_14 = arith.constant 0 : index
    %c1 = arith.constant 1 : index
    %c4 = arith.constant 4 : index
    %41 = vector.load %arg5[%c0_14, %c1, %c4] : memref<2x18x72xbf16, #tpu.memory_space<vmem>>, vector<2x16x64xbf16>
    tpu.vector_store %arg5[%c0_14, %c1, %c4], %40 {strides = array<i32>} : memref<2x18x72xbf16, #tpu.memory_space<vmem>>, vector<2x16x64xbf16>,
    %cst_15 = arith.constant 0.000000e+00 : f32
    %42 = vector.broadcast %cst_15 : f32 to vector<32x64xf32>
    %c0_16 = arith.constant 0 : index
    %c0_17 = arith.constant 0 : index
    %c0_18 = arith.constant 0 : index
    %43 = vector.load %arg5[%c0_16, %c0_17, %c0_18] : memref<2x18x72xbf16, #tpu.memory_space<vmem>>, vector<2x16x72xbf16>
    %44 = vector.shape_cast %43 : vector<2x16x72xbf16> to vector<32x72xbf16>
    %c0_19 = arith.constant 0 : index
    %c0_20 = arith.constant 0 : index
    %c0_21 = arith.constant 0 : index
    %45 = vector.load %arg1[%c0_19, %c0_20, %c0_21] : memref<3x72x64xbf16, #tpu.memory_space<vmem>>, vector<1x72x64xbf16>
    %46 = vector.shape_cast %45 : vector<1x72x64xbf16> to vector<72x64xbf16>
    %cst_22 = arith.constant dense<0.000000e+00> : vector<32x64xf32>
    %47 = tpu.matmul %44, %46, %cst_22 {dimension_numbers = #tpu.dot_dimension_numbers<[1], [0], [0], [1], [0, 0, 1, 1], [], []>} : vector<32x72xbf16>, vector<72x64xbf16>, vector<32x64xf32> -> vector<32x64xf32>
    %48 = arith.addf %42, %47 : vector<32x64xf32>
    %c0_23 = arith.constant 0 : index
    %c1_24 = arith.constant 1 : index
    %c0_25 = arith.constant 0 : index
    %49 = vector.load %arg5[%c0_23, %c1_24, %c0_25] : memref<2x18x72xbf16, #tpu.memory_space<vmem>>, vector<2x16x72xbf16>
    %50 = vector.shape_cast %49 : vector<2x16x72xbf16> to vector<32x72xbf16>
    %c1_26 = arith.constant 1 : index
    %c0_27 = arith.constant 0 : index
    %c0_28 = arith.constant 0 : index
    %51 = vector.load %arg1[%c1_26, %c0_27, %c0_28] : memref<3x72x64xbf16, #tpu.memory_space<vmem>>, vector<1x72x64xbf16>
    %52 = vector.shape_cast %51 : vector<1x72x64xbf16> to vector<72x64xbf16>
    %cst_29 = arith.constant dense<0.000000e+00> : vector<32x64xf32>
    %53 = tpu.matmul %50, %52, %cst_29 {dimension_numbers = #tpu.dot_dimension_numbers<[1], [0], [0], [1], [0, 0, 1, 1], [], []>} : vector<32x72xbf16>, vector<72x64xbf16>, vector<32x64xf32> -> vector<32x64xf32>
    %54 = arith.addf %48, %53 : vector<32x64xf32>
    %c0_30 = arith.constant 0 : index
    %c2 = arith.constant 2 : index
    %c0_31 = arith.constant 0 : index
    %55 = vector.load %arg5[%c0_30, %c2, %c0_31] : memref<2x18x72xbf16, #tpu.memory_space<vmem>>, vector<2x16x72xbf16>
    %56 = vector.shape_cast %55 : vector<2x16x72xbf16> to vector<32x72xbf16>
    %c2_32 = arith.constant 2 : index
    %c0_33 = arith.constant 0 : index
    %c0_34 = arith.constant 0 : index
    %57 = vector.load %arg1[%c2_32, %c0_33, %c0_34] : memref<3x72x64xbf16, #tpu.memory_space<vmem>>, vector<1x72x64xbf16>
    %58 = vector.shape_cast %57 : vector<1x72x64xbf16> to vector<72x64xbf16>
    %cst_35 = arith.constant dense<0.000000e+00> : vector<32x64xf32>
    %59 = tpu.matmul %56, %58, %cst_35 {dimension_numbers = #tpu.dot_dimension_numbers<[1], [0], [0], [1], [0, 0, 1, 1], [], []>} : vector<32x72xbf16>, vector<72x64xbf16>, vector<32x64xf32> -> vector<32x64xf32>
    %60 = arith.addf %54, %59 : vector<32x64xf32>
    %cst_36 = arith.constant dense<0.000000e+00> : vector<64xf32>
    %61 = vector.multi_reduction <add>, %60, %cst_36 [0] : vector<32x64xf32> to vector<64xf32>
    %62 = vector.shape_cast %61 : vector<64xf32> to vector<1x64xf32>
    %63 = arith.mulf %60, %60 : vector<32x64xf32>
    %cst_37 = arith.constant dense<0.000000e+00> : vector<64xf32>
    %64 = vector.multi_reduction <add>, %63, %cst_37 [0] : vector<32x64xf32> to vector<64xf32>
    %65 = vector.shape_cast %64 : vector<64xf32> to vector<1x64xf32>
    %66 = tpu.concatenate %62, %65 in 0 : vector<1x64xf32>, vector<1x64xf32> -> vector<2x64xf32>
    %cst_38 = arith.constant dense<0.000000e+00> : vector<2x64xf32>
    %67 = tpu.matmul %66, %36, %cst_38 {dimension_numbers = #tpu.dot_dimension_numbers<[1], [0], [0], [1], [0, 0, 1, 1], [], []>} : vector<2x64xf32>, vector<64x64xf32>, vector<2x64xf32> -> vector<2x64xf32>
    %cst_39 = arith.constant 0.001953125 : f32
    %68 = vector.broadcast %cst_39 : f32 to vector<2x64xf32>
    %69 = arith.mulf %67, %68 : vector<2x64xf32>
    %70 = vector.extract_strided_slice %69 {offsets = [0, 0], sizes = [1, 64], strides = [1, 1]} : vector<2x64xf32> to vector<1x64xf32>
    %71 = vector.extract_strided_slice %69 {offsets = [1, 0], sizes = [1, 64], strides = [1, 1]} : vector<2x64xf32> to vector<1x64xf32>
    %72 = arith.mulf %70, %70 : vector<1x64xf32>
    %73 = arith.subf %71, %72 : vector<1x64xf32>
    %c0_40 = arith.constant 0 : index
    %c0_41 = arith.constant 0 : index
    %74 = vector.load %arg3[%c0_40, %c0_41] : memref<4x64xf32, #tpu.memory_space<vmem>>, vector<1x64xf32>
    %cst_42 = arith.constant 9.99999974E-6 : f32
    %75 = vector.broadcast %cst_42 : f32 to vector<1x64xf32>
    %76 = arith.addf %73, %75 : vector<1x64xf32>
    %77 = math.rsqrt %76 : vector<1x64xf32>
    %78 = arith.mulf %74, %77 : vector<1x64xf32>
    %79 = vector.broadcast %70 : vector<1x64xf32> to vector<32x64xf32>
    %80 = arith.subf %60, %79 : vector<32x64xf32>
    %81 = vector.broadcast %78 : vector<1x64xf32> to vector<32x64xf32>
    %82 = arith.mulf %80, %81 : vector<32x64xf32>
    %c1_43 = arith.constant 1 : index
    %c0_44 = arith.constant 0 : index
    %83 = vector.load %arg3[%c1_43, %c0_44] : memref<4x64xf32, #tpu.memory_space<vmem>>, vector<1x64xf32>
    %84 = vector.broadcast %83 : vector<1x64xf32> to vector<32x64xf32>
    %85 = arith.addf %82, %84 : vector<32x64xf32>
    %cst_45 = arith.constant 0.000000e+00 : f32
    %86 = vector.broadcast %cst_45 : f32 to vector<32x64xf32>
    %87 = arith.maximumf %85, %86 : vector<32x64xf32>
    %88 = vector.shape_cast %87 : vector<32x64xf32> to vector<2x16x64xf32>
    %89 = arith.truncf %88 : vector<2x16x64xf32> to vector<2x16x64xbf16>
    %c0_46 = arith.constant 0 : index
    %c1_47 = arith.constant 1 : index
    %c4_48 = arith.constant 4 : index
    %90 = vector.load %arg5[%c0_46, %c1_47, %c4_48] : memref<2x18x72xbf16, #tpu.memory_space<vmem>>, vector<2x16x64xbf16>
    tpu.vector_store %arg5[%c0_46, %c1_47, %c4_48], %89 {strides = array<i32>} : memref<2x18x72xbf16, #tpu.memory_space<vmem>>, vector<2x16x64xbf16>,
    %cst_49 = arith.constant 0.000000e+00 : f32
    %91 = vector.broadcast %cst_49 : f32 to vector<32x64xf32>
    %c0_50 = arith.constant 0 : index
    %c0_51 = arith.constant 0 : index
    %c0_52 = arith.constant 0 : index
    %92 = vector.load %arg5[%c0_50, %c0_51, %c0_52] : memref<2x18x72xbf16, #tpu.memory_space<vmem>>, vector<2x16x72xbf16>
    %93 = vector.shape_cast %92 : vector<2x16x72xbf16> to vector<32x72xbf16>
    %c0_53 = arith.constant 0 : index
    %c0_54 = arith.constant 0 : index
    %c0_55 = arith.constant 0 : index
    %94 = vector.load %arg2[%c0_53, %c0_54, %c0_55] : memref<3x72x64xbf16, #tpu.memory_space<vmem>>, vector<1x72x64xbf16>
    %95 = vector.shape_cast %94 : vector<1x72x64xbf16> to vector<72x64xbf16>
    %cst_56 = arith.constant dense<0.000000e+00> : vector<32x64xf32>
    %96 = tpu.matmul %93, %95, %cst_56 {dimension_numbers = #tpu.dot_dimension_numbers<[1], [0], [0], [1], [0, 0, 1, 1], [], []>} : vector<32x72xbf16>, vector<72x64xbf16>, vector<32x64xf32> -> vector<32x64xf32>
    %97 = arith.addf %91, %96 : vector<32x64xf32>
    %c0_57 = arith.constant 0 : index
    %c1_58 = arith.constant 1 : index
    %c0_59 = arith.constant 0 : index
    %98 = vector.load %arg5[%c0_57, %c1_58, %c0_59] : memref<2x18x72xbf16, #tpu.memory_space<vmem>>, vector<2x16x72xbf16>
    %99 = vector.shape_cast %98 : vector<2x16x72xbf16> to vector<32x72xbf16>
    %c1_60 = arith.constant 1 : index
    %c0_61 = arith.constant 0 : index
    %c0_62 = arith.constant 0 : index
    %100 = vector.load %arg2[%c1_60, %c0_61, %c0_62] : memref<3x72x64xbf16, #tpu.memory_space<vmem>>, vector<1x72x64xbf16>
    %101 = vector.shape_cast %100 : vector<1x72x64xbf16> to vector<72x64xbf16>
    %cst_63 = arith.constant dense<0.000000e+00> : vector<32x64xf32>
    %102 = tpu.matmul %99, %101, %cst_63 {dimension_numbers = #tpu.dot_dimension_numbers<[1], [0], [0], [1], [0, 0, 1, 1], [], []>} : vector<32x72xbf16>, vector<72x64xbf16>, vector<32x64xf32> -> vector<32x64xf32>
    %103 = arith.addf %97, %102 : vector<32x64xf32>
    %c0_64 = arith.constant 0 : index
    %c2_65 = arith.constant 2 : index
    %c0_66 = arith.constant 0 : index
    %104 = vector.load %arg5[%c0_64, %c2_65, %c0_66] : memref<2x18x72xbf16, #tpu.memory_space<vmem>>, vector<2x16x72xbf16>
    %105 = vector.shape_cast %104 : vector<2x16x72xbf16> to vector<32x72xbf16>
    %c2_67 = arith.constant 2 : index
    %c0_68 = arith.constant 0 : index
    %c0_69 = arith.constant 0 : index
    %106 = vector.load %arg2[%c2_67, %c0_68, %c0_69] : memref<3x72x64xbf16, #tpu.memory_space<vmem>>, vector<1x72x64xbf16>
    %107 = vector.shape_cast %106 : vector<1x72x64xbf16> to vector<72x64xbf16>
    %cst_70 = arith.constant dense<0.000000e+00> : vector<32x64xf32>
    %108 = tpu.matmul %105, %107, %cst_70 {dimension_numbers = #tpu.dot_dimension_numbers<[1], [0], [0], [1], [0, 0, 1, 1], [], []>} : vector<32x72xbf16>, vector<72x64xbf16>, vector<32x64xf32> -> vector<32x64xf32>
    %109 = arith.addf %103, %108 : vector<32x64xf32>
    %cst_71 = arith.constant dense<0.000000e+00> : vector<64xf32>
    %110 = vector.multi_reduction <add>, %109, %cst_71 [0] : vector<32x64xf32> to vector<64xf32>
    %111 = vector.shape_cast %110 : vector<64xf32> to vector<1x64xf32>
    %112 = arith.mulf %109, %109 : vector<32x64xf32>
    %cst_72 = arith.constant dense<0.000000e+00> : vector<64xf32>
    %113 = vector.multi_reduction <add>, %112, %cst_72 [0] : vector<32x64xf32> to vector<64xf32>
    %114 = vector.shape_cast %113 : vector<64xf32> to vector<1x64xf32>
    %115 = tpu.concatenate %111, %114 in 0 : vector<1x64xf32>, vector<1x64xf32> -> vector<2x64xf32>
    %cst_73 = arith.constant dense<0.000000e+00> : vector<2x64xf32>
    %116 = tpu.matmul %115, %36, %cst_73 {dimension_numbers = #tpu.dot_dimension_numbers<[1], [0], [0], [1], [0, 0, 1, 1], [], []>} : vector<2x64xf32>, vector<64x64xf32>, vector<2x64xf32> -> vector<2x64xf32>
    %cst_74 = arith.constant 0.001953125 : f32
    %117 = vector.broadcast %cst_74 : f32 to vector<2x64xf32>
    %118 = arith.mulf %116, %117 : vector<2x64xf32>
    %119 = vector.extract_strided_slice %118 {offsets = [0, 0], sizes = [1, 64], strides = [1, 1]} : vector<2x64xf32> to vector<1x64xf32>
    %120 = vector.extract_strided_slice %118 {offsets = [1, 0], sizes = [1, 64], strides = [1, 1]} : vector<2x64xf32> to vector<1x64xf32>
    %121 = arith.mulf %119, %119 : vector<1x64xf32>
    %122 = arith.subf %120, %121 : vector<1x64xf32>
    %c2_75 = arith.constant 2 : index
    %c0_76 = arith.constant 0 : index
    %123 = vector.load %arg3[%c2_75, %c0_76] : memref<4x64xf32, #tpu.memory_space<vmem>>, vector<1x64xf32>
    %cst_77 = arith.constant 9.99999974E-6 : f32
    %124 = vector.broadcast %cst_77 : f32 to vector<1x64xf32>
    %125 = arith.addf %122, %124 : vector<1x64xf32>
    %126 = math.rsqrt %125 : vector<1x64xf32>
    %127 = arith.mulf %123, %126 : vector<1x64xf32>
    %128 = vector.broadcast %119 : vector<1x64xf32> to vector<32x64xf32>
    %129 = arith.subf %109, %128 : vector<32x64xf32>
    %130 = vector.broadcast %127 : vector<1x64xf32> to vector<32x64xf32>
    %131 = arith.mulf %129, %130 : vector<32x64xf32>
    %c3 = arith.constant 3 : index
    %c0_78 = arith.constant 0 : index
    %132 = vector.load %arg3[%c3, %c0_78] : memref<4x64xf32, #tpu.memory_space<vmem>>, vector<1x64xf32>
    %133 = vector.broadcast %132 : vector<1x64xf32> to vector<32x64xf32>
    %134 = arith.addf %131, %133 : vector<32x64xf32>
    %c0_79 = arith.constant 0 : index
    %c0_80 = arith.constant 0 : index
    %c0_81 = arith.constant 0 : index
    %135 = vector.load %arg0[%c0_79, %c0_80, %c0_81] : memref<2x16x64xf32, #tpu.memory_space<vmem>>, vector<2x16x64xf32>
    %136 = vector.shape_cast %135 : vector<2x16x64xf32> to vector<32x64xf32>
    %137 = arith.addf %134, %136 : vector<32x64xf32>
    %cst_82 = arith.constant 0.000000e+00 : f32
    %138 = vector.broadcast %cst_82 : f32 to vector<32x64xf32>
    %139 = arith.maximumf %137, %138 : vector<32x64xf32>
    %c0_83 = arith.constant 0 : index
    %c0_84 = arith.constant 0 : index
    %140 = vector.load %arg4[%c0_83, %c0_84] : memref<32x64xf32, #tpu.memory_space<vmem>>, vector<32x64xf32>
    tpu.vector_store %arg4[%c0_83, %c0_84], %139 {strides = array<i32>} : memref<32x64xf32, #tpu.memory_space<vmem>>, vector<32x64xf32>,
    return
  }
}

</mosaic_0001>

<llo_original>
// kernel: tpu_custom_call.1
$region0: #{tpu_custom_call.1}
  #allocation0 [shape = 'u32[]', space=smem, size = 0x4, offset = 0x4, fixed_abs, tag = 'smem constant byte address 0x4 - core index']
  #allocation1 [shape = 'u32[72,128]{1,0:T(1,128)}', space=vmem, size = 0x9000, scoped, tag = 'internal scratch']
  #allocation2 [shape = 'bf16[2,18,72]{2,1,0:T(8,128)(2,1)}', space=vmem, size = 0x3000, scoped, tag = 'scratch operand']
  %s0 = inlined_call_operand.vmem [shape: f32[2,16,64], index: 0, kind: input, shape index: {}]
  %s1 = inlined_call_operand.vmem [shape: bf16[3,72,64], index: 1, kind: input, shape index: {}]
  %s2 = inlined_call_operand.vmem [shape: bf16[3,72,64], index: 2, kind: input, shape index: {}]
  %s3 = inlined_call_operand.vmem [shape: f32[4,64], index: 3, kind: input, shape index: {}]
  %s4 = inlined_call_operand.hbm [shape: f32[32,64], index: 4, kind: output, shape index: {}]
  %s5 = sld [smem:[#allocation0]]
  $region26: #{tpu_custom_call.1} parent=0
    _
  %s7 = ssub.s32 1, %s5
  %s8 = scalar_select 0, %s7, %s5
  $region1: #{tpu_custom_call.1} parent=0
    #allocation3 [shape = 'u8[16384]{0}', space=vmem, size = 0x4000, scoped, tag = 'output window, operand 0, single buffered']
    #allocation4 [shape = 's32[1]{0}', space=sflag, size = 0x4, scoped, tag = 'scoped memory for tpu_custom_call.1']
    %9 = vsyncpa [#allocation4], 0
    // Predicated region
    $region2: #{tpu_custom_call.1} parent=1 // pred_check
      _
    $region3: #{tpu_custom_call.1} parent=1 // pred_check_branch
      %11 = sbr.rel (0) target = $region5
    $region4: #{tpu_custom_call.1} parent=1 // pred_region
      _
    $region5: #{tpu_custom_call.1} parent=1 // pred_fallthru
      _
    // Predicated region
    $region6: #{tpu_custom_call.1} parent=1 // pred_check
      _
    $region7: #{tpu_custom_call.1} parent=1 // pred_check_branch
      %13 = sbr.rel (0) target = $region9
    $region8: #{tpu_custom_call.1} parent=1 // pred_region
      _
    $region9: #{tpu_custom_call.1} parent=1 // pred_fallthru
      _
    // Predicated region
    $region10: #{tpu_custom_call.1} parent=1 // pred_check
      _
    $region11: #{tpu_custom_call.1} parent=1 // pred_check_branch
      %15 = sbr.rel (0) target = $region13
    $region12: #{tpu_custom_call.1} parent=1 // pred_region
      _
    $region13: #{tpu_custom_call.1} parent=1 // pred_fallthru
      _
    // Predicated region
    $region14: #{tpu_custom_call.1} parent=1 // pred_check
      _
    $region15: #{tpu_custom_call.1} parent=1 // pred_check_branch
      %17 = sbr.rel (0) target = $region17
    $region16: #{tpu_custom_call.1} parent=1 // pred_region
      _
    $region17: #{tpu_custom_call.1} parent=1 // pred_fallthru
      _
    %v19 = vlaneseq
    %v20 = vshrl.u32 %v19, 7
    %v21 = vadd.s32 %v20, 8
    %v22 = vadd.s32 %v20, 16
    %v23 = vadd.s32 %v20, 24
    %v24 = vadd.s32 %v20, 32
    %v25 = vadd.s32 %v20, 40
    %v26 = vadd.s32 %v20, 48
    %v27 = vadd.s32 %v20, 56
    %v28 = vlaneseq
    %v29 = vand.u32 %v28, 127
    %vm30 = vcmp.lt.s32.totalorder %v20, 0
    %v31 = vsub.s32 0, %v20
    %v32 = vsel %vm30, %v31, %v20
    %v33 = vshrl.u32 %v32, 2
    %v34 = vand.u32 %v32, 3
    %v35 = vsub.s32 0, %v34
    %v36 = vsel %vm30, %v35, %v34
    %vm37 = vcmp.lt.s32.totalorder %v21, 0
    %v38 = vsub.s32 0, %v21
    %v39 = vsel %vm37, %v38, %v21
    %v40 = vshrl.u32 %v39, 2
    %v41 = vand.u32 %v39, 3
    %v42 = vsub.s32 0, %v41
    %v43 = vsel %vm37, %v42, %v41
    %vm44 = vcmp.lt.s32.totalorder %v22, 0
    %v45 = vsub.s32 0, %v22
    %v46 = vsel %vm44, %v45, %v22
    %v47 = vshrl.u32 %v46, 2
    %v48 = vand.u32 %v46, 3
    %v49 = vsub.s32 0, %v48
    %v50 = vsel %vm44, %v49, %v48
    %vm51 = vcmp.lt.s32.totalorder %v23, 0
    %v52 = vsub.s32 0, %v23
    %v53 = vsel %vm51, %v52, %v23
    %v54 = vshrl.u32 %v53, 2
    %v55 = vand.u32 %v53, 3
    %v56 = vsub.s32 0, %v55
    %v57 = vsel %vm51, %v56, %v55
    %vm58 = vcmp.lt.s32.totalorder %v24, 0
    %v59 = vsub.s32 0, %v24
    %v60 = vsel %vm58, %v59, %v24
    %v61 = vshrl.u32 %v60, 2
    %v62 = vand.u32 %v60, 3
    %v63 = vsub.s32 0, %v62
    %v64 = vsel %vm58, %v63, %v62
    %vm65 = vcmp.lt.s32.totalorder %v25, 0
    %v66 = vsub.s32 0, %v25
    %v67 = vsel %vm65, %v66, %v25
    %v68 = vshrl.u32 %v67, 2
    %v69 = vand.u32 %v67, 3
    %v70 = vsub.s32 0, %v69
    %v71 = vsel %vm65, %v70, %v69
    %vm72 = vcmp.lt.s32.totalorder %v26, 0
    %v73 = vsub.s32 0, %v26
    %v74 = vsel %vm72, %v73, %v26
    %v75 = vshrl.u32 %v74, 2
    %v76 = vand.u32 %v74, 3
    %v77 = vsub.s32 0, %v76
    %v78 = vsel %vm72, %v77, %v76
    %vm79 = vcmp.lt.s32.totalorder %v27, 0
    %v80 = vsub.s32 0, %v27
    %v81 = vsel %vm79, %v80, %v27
    %v82 = vshrl.u32 %v81, 2
    %v83 = vand.u32 %v81, 3
    %v84 = vsub.s32 0, %v83
    %v85 = vsel %vm79, %v84, %v83
    %vm86 = vcmp.ne.s32.totalorder %v36, 0
    %vm87 = vcmp.ne.s32.totalorder %v43, 0
    %vm88 = vcmp.ne.s32.totalorder %v50, 0
    %vm89 = vcmp.ne.s32.totalorder %v57, 0
    %vm90 = vcmp.ne.s32.totalorder %v64, 0
    %vm91 = vcmp.ne.s32.totalorder %v71, 0
    %vm92 = vcmp.ne.s32.totalorder %v78, 0
    %vm93 = vcmp.ne.s32.totalorder %v85, 0
    %vm94 = vcmp.lt.s32.totalorder %v36, 0
    %vm95 = vcmp.lt.s32.totalorder %v43, 0
    %vm96 = vcmp.lt.s32.totalorder %v50, 0
    %vm97 = vcmp.lt.s32.totalorder %v57, 0
    %vm98 = vcmp.lt.s32.totalorder %v64, 0
    %vm99 = vcmp.lt.s32.totalorder %v71, 0
    %vm100 = vcmp.lt.s32.totalorder %v78, 0
    %vm101 = vcmp.lt.s32.totalorder %v85, 0
    %vm102 = vmand %vm94, %vm86
    %vm103 = vmand %vm95, %vm87
    %vm104 = vmand %vm96, %vm88
    %vm105 = vmand %vm97, %vm89
    %vm106 = vmand %vm98, %vm90
    %vm107 = vmand %vm99, %vm91
    %vm108 = vmand %vm100, %vm92
    %vm109 = vmand %vm101, %vm93
    %v110 = vadd.s32 %v36, 4
    %v111 = vadd.s32 %v43, 4
    %v112 = vadd.s32 %v50, 4
    %v113 = vadd.s32 %v57, 4
    %v114 = vadd.s32 %v64, 4
    %v115 = vadd.s32 %v71, 4
    %v116 = vadd.s32 %v78, 4
    %v117 = vadd.s32 %v85, 4
    %v118 = vsel %vm102, %v110, %v36
    %v119 = vsel %vm103, %v111, %v43
    %v120 = vsel %vm104, %v112, %v50
    %v121 = vsel %vm105, %v113, %v57
    %v122 = vsel %vm106, %v114, %v64
    %v123 = vsel %vm107, %v115, %v71
    %v124 = vsel %vm108, %v116, %v78
    %v125 = vsel %vm109, %v117, %v85
    %vm126 = vcmp.lt.s32.totalorder %v29, 0
    %v127 = vsub.s32 0, %v29
    %v128 = vsel %vm126, %v127, %v29
    %v129 = vshrl.u32 %v128, 2
    %v130 = vand.u32 %v128, 3
    %v131 = vsub.s32 0, %v130
    %v132 = vsel %vm126, %v131, %v130
    %vm133 = vcmp.ne.s32.totalorder %v132, 0
    %vm134 = vcmp.lt.s32.totalorder %v132, 0
    %vm135 = vmand %vm134, %vm133
    %v136 = vadd.s32 %v132, 4
    %v137 = vsel %vm135, %v136, %v132
    %vm138 = vcmp.eq.s32.totalorder %v118, %v137
    %vm139 = vcmp.eq.s32.totalorder %v119, %v137
    %vm140 = vcmp.eq.s32.totalorder %v120, %v137
    %vm141 = vcmp.eq.s32.totalorder %v121, %v137
    %vm142 = vcmp.eq.s32.totalorder %v122, %v137
    %vm143 = vcmp.eq.s32.totalorder %v123, %v137
    %vm144 = vcmp.eq.s32.totalorder %v124, %v137
    %vm145 = vcmp.eq.s32.totalorder %v125, %v137
    %v146 = vsel %vm138, 1, 0
    %v147 = vsel %vm139, 1, 0
    %v148 = vsel %vm140, 1, 0
    %v149 = vsel %vm141, 1, 0
    %v150 = vsel %vm142, 1, 0
    %v151 = vsel %vm143, 1, 0
    %v152 = vsel %vm144, 1, 0
    %v153 = vsel %vm145, 1, 0
    %v154 = vcvt.s32.f32 %v146
    %v155 = vcvt.s32.f32 %v147
    %v156 = vcvt.s32.f32 %v148
    %v157 = vcvt.s32.f32 %v149
    %v158 = vcvt.s32.f32 %v150
    %v159 = vcvt.s32.f32 %v151
    %v160 = vcvt.s32.f32 %v152
    %v161 = vcvt.s32.f32 %v153
    %vm162 = vcmask 584704
    %163 = vst.msk [vmem:[#allocation2] sm:$0xf] %vm162, 0
    %164 = vst.msk [vmem:[#allocation2 + $0x4] sm:$0xf] %vm162, 0
    %vm165 = vcmask 581632
    %166 = vst.msk [vmem:[#allocation2 + $0x8] sm:$0x1] %vm165, 0
    %167 = vst.msk [vmem:[#allocation2 + $0xc] sm:$0xf] %vm162, 0
    %168 = vst.msk [vmem:[#allocation2 + $0x10] sm:$0xf] %vm162, 0
    %169 = vst.msk [vmem:[#allocation2 + $0x14] sm:$0x1] %vm165, 0
    %v170 = vld [vmem:[%s0] sm:$0xff]
    %v171 = vld [vmem:[%s0 + $0x8] sm:$0xff]
    %v172 = vld [vmem:[%s0 + $0x10] sm:$0xff]
    %v173 = vld [vmem:[%s0 + $0x18] sm:$0xff]
    %v174 = vpack.c.bf16 %v170, %v170
    %v175 = vpack.c.bf16 %v171, %v171
    %v176 = vpack.c.bf16 %v172, %v172
    %v177 = vpack.c.bf16 %v173, %v173
    %vm178 = vsmask.f32 256
    %vm179 = vsmask.f32 4368
    %vm180 = vmor %vm178, %vm179
    %v182 = vshrl.u32 %v174, 16
    %v184 = vrot.slane %v182, 7
    %v185 = vshll.u32 %v174, 16
    %v187 = vor.u32 %v184, %v185
    %v188 = vrot.slane %v184, 4
    %v190 = vshrl.u32 %v175, 16
    %v192 = vrot.slane %v190, 7
    %v193 = vshll.u32 %v175, 16
    %v195 = vor.u32 %v192, %v193
    %v196 = vsel %vm180, %v188, %v195
    %v197 = vrot.slane %v192, 4
    %v199 = vshrl.u32 %v176, 16
    %v201 = vrot.slane %v199, 7
    %v202 = vshll.u32 %v176, 16
    %v204 = vor.u32 %v201, %v202
    %v205 = vrot.slane %v201, 4
    %v207 = vshrl.u32 %v177, 16
    %v209 = vrot.slane %v207, 7
    %v210 = vshll.u32 %v177, 16
    %v212 = vor.u32 %v209, %v210
    %v213 = vsel %vm180, %v205, %v212
    %v214 = vrot.slane %v209, 4
    %215 = vrot.lane.b32.xlu0 %v187, 4
    %v216 = vpop.permute.xlu0 %215
    %217 = vrot.lane.b32.xlu0 %v196, 4
    %v218 = vpop.permute.xlu0 %217
    %219 = vrot.lane.b32.xlu0 %v197, 4
    %v220 = vpop.permute.xlu0 %219
    %221 = vrot.lane.b32.xlu0 %v204, 4
    %v222 = vpop.permute.xlu0 %221
    %223 = vrot.lane.b32.xlu0 %v213, 4
    %v224 = vpop.permute.xlu0 %223
    %225 = vrot.lane.b32.xlu0 %v214, 4
    %v226 = vpop.permute.xlu0 %225
    %vm233 = vcmask 551968
    %vm234 = vsmask.f32 7938
    %vm235 = vmand %vm233, %vm234
    %v236 = vld [vmem:[#allocation2] sm:$0xf]
    %v237 = vsel %vm235, %v216, %v236
    %238 = vst [vmem:[#allocation2] sm:$0xf] %v237
    %vm239 = vcmask 551968
    %240 = vst.msk [vmem:[#allocation2 + $0x4] sm:$0xf] %vm239, %v218
    %vm241 = vcmask 548896
    %vm242 = vmand %vm241, %vm178
    %v243 = vld [vmem:[#allocation2 + $0x8] sm:$0x1]
    %v244 = vsel %vm242, %v220, %v243
    %245 = vst [vmem:[#allocation2 + $0x8] sm:$0x1] %v244
    %v246 = vld [vmem:[#allocation2 + $0xc] sm:$0xf]
    %v247 = vsel %vm235, %v222, %v246
    %248 = vst [vmem:[#allocation2 + $0xc] sm:$0xf] %v247
    %249 = vst.msk [vmem:[#allocation2 + $0x10] sm:$0xf] %vm239, %v224
    %v250 = vld [vmem:[#allocation2 + $0x14] sm:$0x1]
    %v251 = vsel %vm242, %v226, %v250
    %252 = vst [vmem:[#allocation2 + $0x14] sm:$0x1] %v251
    %v253 = vld [vmem:[#allocation2] sm:$0xf]
    %v254 = vld [vmem:[#allocation2 + $0x4] sm:$0xf]
    %v255 = vld [vmem:[#allocation2 + $0xc] sm:$0xf]
    %v256 = vld [vmem:[#allocation2 + $0x10] sm:$0xf]
    %v257 = vld [vmem:[%s1] sm:$0xf]
    %v258 = vld [vmem:[%s1 + $0x4] sm:$0xf]
    %v259 = vld [vmem:[%s1 + $0x8] sm:$0xf]
    %v260 = vld [vmem:[%s1 + $0xc] sm:$0xf]
    %v261 = vld [vmem:[%s1 + $0x10] sm:$0xf]
    %v262 = vld [vmem:[%s1 + $0x14] sm:$0xf]
    %v263 = vld [vmem:[%s1 + $0x18] sm:$0xf]
    %v264 = vld [vmem:[%s1 + $0x1c] sm:$0xf]
    %v265 = vld [vmem:[%s1 + $0x20] sm:$0xf]
    %v266 = vld [vmem:[#allocation2 + $0x8] sm:$0x1]
    %v267 = vld [vmem:[#allocation2 + $0x14] sm:$0x1]
    %vm268 = vsmask.f32 3328
    %vm269 = vsmask.f32 7440
    %vm270 = vmor %vm268, %vm269
    %v272 = vshrl.u32 %v253, 16
    %v274 = vrot.slane %v272, 4
    %v275 = vshll.u32 %v253, 16
    %v277 = vrot.slane %v275, 5
    %v278 = vor.u32 %v274, %v277
    %v279 = vrot.slane %v278, 4
    %v281 = vshll.u32 %v254, 16
    %v283 = vrot.slane %v281, 5
    %v284 = vsel %vm270, %v279, %v283
    %v285 = vshrl.u32 %v254, 16
    %v287 = vrot.slane %v285, 4
    %v288 = vor.u32 %v287, %v283
    %v289 = vrot.slane %v288, 4
    %v291 = vshll.u32 %v266, 16
    %v293 = vrot.slane %v291, 5
    %v294 = vsel %vm270, %v289, %v293
    %v296 = vshrl.u32 %v255, 16
    %v298 = vrot.slane %v296, 4
    %v299 = vshll.u32 %v255, 16
    %v301 = vrot.slane %v299, 5
    %v302 = vor.u32 %v298, %v301
    %v303 = vrot.slane %v302, 4
    %v305 = vshll.u32 %v256, 16
    %v307 = vrot.slane %v305, 5
    %v308 = vsel %vm270, %v303, %v307
    %v309 = vshrl.u32 %v256, 16
    %v311 = vrot.slane %v309, 4
    %v312 = vor.u32 %v311, %v307
    %v313 = vrot.slane %v312, 4
    %v315 = vshll.u32 %v267, 16
    %v317 = vrot.slane %v315, 5
    %v318 = vsel %vm270, %v313, %v317
    %s319 = scalar_lea.vmem %s1, 36
    %v320 = vld [vmem:[%s319] sm:$0xf]
    %v321 = vld [vmem:[%s319 + $0x4] sm:$0xf]
    %v322 = vld [vmem:[%s319 + $0x8] sm:$0xf]
    %v323 = vld [vmem:[%s319 + $0xc] sm:$0xf]
    %v324 = vld [vmem:[%s319 + $0x10] sm:$0xf]
    %v325 = vld [vmem:[%s319 + $0x14] sm:$0xf]
    %v326 = vld [vmem:[%s319 + $0x18] sm:$0xf]
    %v327 = vld [vmem:[%s319 + $0x1c] sm:$0xf]
    %v328 = vld [vmem:[%s319 + $0x20] sm:$0xf]
    %v329 = vunpack.c.l.b16 %v284
    %v330 = vunpack.c.l.b16 %v294
    %v331 = vunpack.c.l.b16 %v308
    %v332 = vunpack.c.l.b16 %v318
    %v333 = vpack.c.b16 %v330, %v329
    %v334 = vpack.c.b16 %v332, %v331
    %v344 = vunpack.c.l.b16 %v320
    %v345 = vunpack.c.l.b16 %v321
    %v346 = vunpack.c.l.b16 %v322
    %v347 = vunpack.c.l.b16 %v323
    %v348 = vunpack.c.l.b16 %v324
    %v349 = vunpack.c.l.b16 %v325
    %v350 = vunpack.c.l.b16 %v326
    %v351 = vunpack.c.l.b16 %v327
    %v352 = vunpack.c.l.b16 %v328
    %v353 = vpack.c.b16 %v345, %v344
    %v354 = vpack.c.b16 %v347, %v346
    %v355 = vpack.c.b16 %v349, %v348
    %v356 = vpack.c.b16 %v351, %v350
    %v357 = vpack.c.b16 %v352, %v352
    %vm362 = vcmask 588800
    %v364 = vsel %vm362, %v333, 0
    %v367 = vsel %vm362, %v334, 0
    %vm369 = vcmask 1043456
    %v371 = vsel %vm369, %v357, 0
    %373 = vmatpush.bf16.msra.mxu0 0
    %374 = vmatpush.bf16.msra.mxu0 0
    %375 = vmatpush.bf16.msra.mxu0 0
    %376 = vmatpush.bf16.msra.mxu0 %v371
    %377 = vmatpush.bf16.msra.mxu0 %v356
    %378 = vmatpush.bf16.msra.mxu0 %v355
    %379 = vmatpush.bf16.msra.mxu0 %v354
    %380 = vmatpush.bf16.msra.mxu0 %v353
    %381 = vmatmul.bf16.gmra.mxu0 %v364
    %v382 = vpop.f32.mrf.mxu0
    %v383 = vadd.f32 0.0, %v382
    %v384 = vpop.f32.mrf.mxu0
    %v385 = vadd.f32 0.0, %v384
    %386 = vmatmul.bf16.gmra.mxu0 %v367
    %v387 = vpop.f32.mrf.mxu0
    %v388 = vadd.f32 0.0, %v387
    %v389 = vpop.f32.mrf.mxu0
    %v390 = vadd.f32 0.0, %v389
    %391 = vdwg.mxu0
    %v396 = vunpack.c.l.b16 %v253
    %v397 = vunpack.c.l.b16 %v254
    %v398 = vunpack.c.l.b16 %v255
    %v399 = vunpack.c.l.b16 %v256
    %v400 = vpack.c.b16 %v397, %v396
    %v401 = vpack.c.b16 %v399, %v398
    %v411 = vunpack.c.l.b16 %v257
    %v412 = vunpack.c.l.b16 %v258
    %v413 = vunpack.c.l.b16 %v259
    %v414 = vunpack.c.l.b16 %v260
    %v415 = vunpack.c.l.b16 %v261
    %v416 = vunpack.c.l.b16 %v262
    %v417 = vunpack.c.l.b16 %v263
    %v418 = vunpack.c.l.b16 %v264
    %v419 = vunpack.c.l.b16 %v265
    %v420 = vpack.c.b16 %v412, %v411
    %v421 = vpack.c.b16 %v414, %v413
    %v422 = vpack.c.b16 %v416, %v415
    %v423 = vpack.c.b16 %v418, %v417
    %v424 = vpack.c.b16 %v419, %v419
    %v430 = vsel %vm362, %v400, 0
    %v433 = vsel %vm362, %v401, 0
    %v436 = vsel %vm369, %v424, 0
    %438 = vmatpush.bf16.msra.mxu0 0
    %439 = vmatpush.bf16.msra.mxu0 0
    %440 = vmatpush.bf16.msra.mxu0 0
    %441 = vmatpush.bf16.msra.mxu0 %v436
    %442 = vmatpush.bf16.msra.mxu0 %v423
    %443 = vmatpush.bf16.msra.mxu0 %v422
    %444 = vmatpush.bf16.msra.mxu0 %v421
    %445 = vmatpush.bf16.msra.mxu0 %v420
    %446 = vmatmul.bf16.gmra.mxu0 %v430
    %v447 = vpop.f32.mrf.mxu0
    %v448 = vadd.f32 %v383, %v447
    %v449 = vpop.f32.mrf.mxu0
    %v450 = vadd.f32 %v385, %v449
    %451 = vmatmul.bf16.gmra.mxu0 %v433
    %v452 = vpop.f32.mrf.mxu0
    %v453 = vadd.f32 %v388, %v452
    %v454 = vpop.f32.mrf.mxu0
    %v455 = vadd.f32 %v390, %v454
    %456 = vdwg.mxu0
    %v457 = vld [vmem:[#allocation2] sm:$0xe]
    %v458 = vld [vmem:[#allocation2 + $0xc] sm:$0xe]
    %vm463 = vcmask 1042432
    %vm464 = vcmask 1046532
    %vm465 = vmor %vm463, %vm464
    %v466 = vrot.slane %v457, 5
    %v467 = vrot.slane %v466, 4
    %v468 = vrot.slane %v254, 5
    %v469 = vsel %vm465, %v467, %v468
    %v470 = vrot.slane %v468, 4
    %v471 = vrot.slane %v266, 5
    %v472 = vsel %vm465, %v470, %v471
    %v473 = vrot.slane %v458, 5
    %v474 = vrot.slane %v473, 4
    %v475 = vrot.slane %v256, 5
    %v476 = vsel %vm465, %v474, %v475
    %v477 = vrot.slane %v475, 4
    %v478 = vrot.slane %v267, 5
    %v479 = vsel %vm465, %v477, %v478
    %s480 = scalar_lea.vmem %s1, 72
    %v481 = vld [vmem:[%s480] sm:$0xf]
    %v482 = vld [vmem:[%s480 + $0x4] sm:$0xf]
    %v483 = vld [vmem:[%s480 + $0x8] sm:$0xf]
    %v484 = vld [vmem:[%s480 + $0xc] sm:$0xf]
    %v485 = vld [vmem:[%s480 + $0x10] sm:$0xf]
    %v486 = vld [vmem:[%s480 + $0x14] sm:$0xf]
    %v487 = vld [vmem:[%s480 + $0x18] sm:$0xf]
    %v488 = vld [vmem:[%s480 + $0x1c] sm:$0xf]
    %v489 = vld [vmem:[%s480 + $0x20] sm:$0xf]
    %v490 = vunpack.c.l.b16 %v469
    %v491 = vunpack.c.l.b16 %v472
    %v492 = vunpack.c.l.b16 %v476
    %v493 = vunpack.c.l.b16 %v479
    %v494 = vpack.c.b16 %v491, %v490
    %v495 = vpack.c.b16 %v493, %v492
    %v505 = vunpack.c.l.b16 %v481
    %v506 = vunpack.c.l.b16 %v482
    %v507 = vunpack.c.l.b16 %v483
    %v508 = vunpack.c.l.b16 %v484
    %v509 = vunpack.c.l.b16 %v485
    %v510 = vunpack.c.l.b16 %v486
    %v511 = vunpack.c.l.b16 %v487
    %v512 = vunpack.c.l.b16 %v488
    %v513 = vunpack.c.l.b16 %v489
    %v514 = vpack.c.b16 %v506, %v505
    %v515 = vpack.c.b16 %v508, %v507
    %v516 = vpack.c.b16 %v510, %v509
    %v517 = vpack.c.b16 %v512, %v511
    %v518 = vpack.c.b16 %v513, %v513
    %v524 = vsel %vm362, %v494, 0
    %v527 = vsel %vm362, %v495, 0
    %v530 = vsel %vm369, %v518, 0
    %532 = vmatpush.bf16.msra.mxu0 0
    %533 = vmatpush.bf16.msra.mxu0 0
    %534 = vmatpush.bf16.msra.mxu0 0
    %535 = vmatpush.bf16.msra.mxu0 %v530
    %536 = vmatpush.bf16.msra.mxu0 %v517
    %537 = vmatpush.bf16.msra.mxu0 %v516
    %538 = vmatpush.bf16.msra.mxu0 %v515
    %539 = vmatpush.bf16.msra.mxu0 %v514
    %540 = vmatmul.bf16.gmra.mxu0 %v524
    %v541 = vpop.f32.mrf.mxu0
    %v542 = vadd.f32 0.0, %v541
    %v543 = vpop.f32.mrf.mxu0
    %v544 = vadd.f32 0.0, %v543
    %545 = vmatmul.bf16.gmra.mxu0 %v527
    %v546 = vpop.f32.mrf.mxu0
    %v547 = vadd.f32 0.0, %v546
    %v548 = vpop.f32.mrf.mxu0
    %v549 = vadd.f32 0.0, %v548
    %550 = vdwg.mxu0
    %v551 = vadd.f32 %v448, %v542
    %v552 = vadd.f32 %v450, %v544
    %v553 = vadd.f32 %v453, %v547
    %v554 = vadd.f32 %v455, %v549
    %vm555 = vcmask 523264
    %v556 = vsel %vm555, %v551, 0.0
    %v557 = vsel %vm555, %v552, 0.0
    %v558 = vadd.f32 %v556, %v557
    %v559 = vsel %vm555, %v553, 0.0
    %v560 = vadd.f32 %v558, %v559
    %v561 = vsel %vm555, %v554, 0.0
    %v562 = vadd.f32 %v560, %v561
    %v563 = vrot.slane %v562, 4
    %v564 = vadd.f32 %v562, %v563
    %v565 = vrot.slane %v564, 2
    %v566 = vadd.f32 %v564, %v565
    %v567 = vrot.slane %v566, 1
    %v568 = vadd.f32 %v566, %v567
    %v569 = vmul.f32 %v551, %v551
    %v570 = vmul.f32 %v552, %v552
    %v571 = vmul.f32 %v553, %v553
    %v572 = vmul.f32 %v554, %v554
    %v573 = vsel %vm555, %v569, 0.0
    %v574 = vsel %vm555, %v570, 0.0
    %v575 = vadd.f32 %v573, %v574
    %v576 = vsel %vm555, %v571, 0.0
    %v577 = vadd.f32 %v575, %v576
    %v578 = vsel %vm555, %v572, 0.0
    %v579 = vadd.f32 %v577, %v578
    %v580 = vrot.slane %v579, 4
    %v581 = vadd.f32 %v579, %v580
    %v582 = vrot.slane %v581, 2
    %v583 = vadd.f32 %v581, %v582
    %v584 = vrot.slane %v583, 1
    %v585 = vadd.f32 %v583, %v584
    %vm586 = vcmask 1040384
    %v587 = vsel %vm586, %v568, %v585
    %v589 = vsel %vm555, %v587, 0
    %591 = vmatpush.msra.mxu0 0.0
    %592 = vmatpush.msra.mxu0 0.0
    %593 = vmatpush.msra.mxu0 0.0
    %594 = vmatpush.msra.mxu0 0.0
    %595 = vmatpush.msra.mxu0 0.0
    %596 = vmatpush.msra.mxu0 0.0
    %597 = vmatpush.msra.mxu0 0.0
    %598 = vmatpush.msra.mxu0 0.0
    %599 = vmatpush.msra.mxu0 %v161
    %600 = vmatpush.msra.mxu0 %v160
    %601 = vmatpush.msra.mxu0 %v159
    %602 = vmatpush.msra.mxu0 %v158
    %603 = vmatpush.msra.mxu0 %v157
    %604 = vmatpush.msra.mxu0 %v156
    %605 = vmatpush.msra.mxu0 %v155
    %606 = vmatpush.msra.mxu0 %v154
    %607 = vmatmul.f32.gmra.mxu0 %v589
    %v608 = vpop.f32.mrf.mxu0
    %v609 = vadd.f32 0.0, %v608
    %610 = vdwg.mxu0
    %v611 = vmul.f32 %v609, 0.001953125
    %v612 = vmul.f32 %v611, %v611
    %v614 = vrot.slane %v612, 7
    %v616 = vsub.f32 %v611, %v614
    %v617 = vld [vmem:[%s3] sm:$0x1]
    %v618 = vadd.f32 %v616, 1e-05
    %v619 = vrsqrt.pop %v618
    %v620 = vmul.f32 %v619, %v618
    %v621 = vmul.f32 %v620, %v619
    %v622 = vmul.f32 0.5, %v621
    %v623 = vsub.f32 1.5, %v622
    %v624 = vmul.f32 %v619, %v623
    %vm625 = vweird.f32 %v618
    %vm626 = vweird.f32 %v619
    %vm627 = vmor %vm625, %vm626
    %v628 = vsel %vm627, %v619, %v624
    %v630 = vrot.slane %v628, 1
    %v632 = vmul.f32 %v617, %v630
    %v633 = vperm.slane %v611, 0
    %v634 = vsub.f32 %v551, %v633
    %v635 = vsub.f32 %v552, %v633
    %v636 = vsub.f32 %v553, %v633
    %v637 = vsub.f32 %v554, %v633
    %v638 = vperm.slane %v632, 0
    %v639 = vmul.f32 %v634, %v638
    %v640 = vmul.f32 %v635, %v638
    %v641 = vmul.f32 %v636, %v638
    %v642 = vmul.f32 %v637, %v638
    %v643 = vld [vmem:[%s3 + $0x1] sm:$0x1]
    %v644 = vperm.slane %v643, 0
    %v645 = vadd.f32 %v639, %v644
    %v646 = vadd.f32 %v640, %v644
    %v647 = vadd.f32 %v641, %v644
    %v648 = vadd.f32 %v642, %v644
    %v649 = vmax.f32 %v645, 0.0
    %v650 = vmax.f32 %v646, 0.0
    %v651 = vmax.f32 %v647, 0.0
    %v652 = vmax.f32 %v648, 0.0
    %v653 = vpack.c.bf16 %v649, %v649
    %v654 = vpack.c.bf16 %v650, %v650
    %v655 = vpack.c.bf16 %v651, %v651
    %v656 = vpack.c.bf16 %v652, %v652
    %v658 = vshrl.u32 %v653, 16
    %v660 = vrot.slane %v658, 7
    %v661 = vshll.u32 %v653, 16
    %v663 = vor.u32 %v660, %v661
    %v664 = vrot.slane %v660, 4
    %v666 = vshrl.u32 %v654, 16
    %v668 = vrot.slane %v666, 7
    %v669 = vshll.u32 %v654, 16
    %v671 = vor.u32 %v668, %v669
    %v672 = vsel %vm180, %v664, %v671
    %v673 = vrot.slane %v668, 4
    %v675 = vshrl.u32 %v655, 16
    %v677 = vrot.slane %v675, 7
    %v678 = vshll.u32 %v655, 16
    %v680 = vor.u32 %v677, %v678
    %v681 = vrot.slane %v677, 4
    %v683 = vshrl.u32 %v656, 16
    %v685 = vrot.slane %v683, 7
    %v686 = vshll.u32 %v656, 16
    %v688 = vor.u32 %v685, %v686
    %v689 = vsel %vm180, %v681, %v688
    %v690 = vrot.slane %v685, 4
    %691 = vrot.lane.b32.xlu0 %v663, 4
    %v692 = vpop.permute.xlu0 %691
    %693 = vrot.lane.b32.xlu0 %v672, 4
    %v694 = vpop.permute.xlu0 %693
    %695 = vrot.lane.b32.xlu0 %v673, 4
    %v696 = vpop.permute.xlu0 %695
    %697 = vrot.lane.b32.xlu0 %v680, 4
    %v698 = vpop.permute.xlu0 %697
    %699 = vrot.lane.b32.xlu0 %v689, 4
    %v700 = vpop.permute.xlu0 %699
    %701 = vrot.lane.b32.xlu0 %v690, 4
    %v702 = vpop.permute.xlu0 %701
    %v709 = vsel %vm235, %v692, %v253
    %710 = vst [vmem:[#allocation2] sm:$0xf] %v709
    %711 = vst.msk [vmem:[#allocation2 + $0x4] sm:$0xf] %vm239, %v694
    %v712 = vld [vmem:[#allocation2 + $0x8] sm:$0x1]
    %v713 = vsel %vm242, %v696, %v712
    %714 = vst [vmem:[#allocation2 + $0x8] sm:$0x1] %v713
    %v715 = vld [vmem:[#allocation2 + $0xc] sm:$0xf]
    %v716 = vsel %vm235, %v698, %v715
    %717 = vst [vmem:[#allocation2 + $0xc] sm:$0xf] %v716
    %718 = vst.msk [vmem:[#allocation2 + $0x10] sm:$0xf] %vm239, %v700
    %v719 = vld [vmem:[#allocation2 + $0x14] sm:$0x1]
    %v720 = vsel %vm242, %v702, %v719
    %721 = vst [vmem:[#allocation2 + $0x14] sm:$0x1] %v720
    %v722 = vld [vmem:[#allocation2] sm:$0xf]
    %v723 = vld [vmem:[#allocation2 + $0x4] sm:$0xf]
    %v724 = vld [vmem:[#allocation2 + $0xc] sm:$0xf]
    %v725 = vld [vmem:[#allocation2 + $0x10] sm:$0xf]
    %v726 = vld [vmem:[%s2] sm:$0xf]
    %v727 = vld [vmem:[%s2 + $0x4] sm:$0xf]
    %v728 = vld [vmem:[%s2 + $0x8] sm:$0xf]
    %v729 = vld [vmem:[%s2 + $0xc] sm:$0xf]
    %v730 = vld [vmem:[%s2 + $0x10] sm:$0xf]
    %v731 = vld [vmem:[%s2 + $0x14] sm:$0xf]
    %v732 = vld [vmem:[%s2 + $0x18] sm:$0xf]
    %v733 = vld [vmem:[%s2 + $0x1c] sm:$0xf]
    %v734 = vld [vmem:[%s2 + $0x20] sm:$0xf]
    %v735 = vld [vmem:[#allocation2 + $0x8] sm:$0x1]
    %v736 = vld [vmem:[#allocation2 + $0x14] sm:$0x1]
    %v738 = vshrl.u32 %v722, 16
    %v740 = vrot.slane %v738, 4
    %v741 = vshll.u32 %v722, 16
    %v743 = vrot.slane %v741, 5
    %v744 = vor.u32 %v740, %v743
    %v745 = vrot.slane %v744, 4
    %v747 = vshll.u32 %v723, 16
    %v749 = vrot.slane %v747, 5
    %v750 = vsel %vm270, %v745, %v749
    %v751 = vshrl.u32 %v723, 16
    %v753 = vrot.slane %v751, 4
    %v754 = vor.u32 %v753, %v749
    %v755 = vrot.slane %v754, 4
    %v757 = vshll.u32 %v735, 16
    %v759 = vrot.slane %v757, 5
    %v760 = vsel %vm270, %v755, %v759
    %v762 = vshrl.u32 %v724, 16
    %v764 = vrot.slane %v762, 4
    %v765 = vshll.u32 %v724, 16
    %v767 = vrot.slane %v765, 5
    %v768 = vor.u32 %v764, %v767
    %v769 = vrot.slane %v768, 4
    %v771 = vshll.u32 %v725, 16
    %v773 = vrot.slane %v771, 5
    %v774 = vsel %vm270, %v769, %v773
    %v775 = vshrl.u32 %v725, 16
    %v777 = vrot.slane %v775, 4
    %v778 = vor.u32 %v777, %v773
    %v779 = vrot.slane %v778, 4
    %v781 = vshll.u32 %v736, 16
    %v783 = vrot.slane %v781, 5
    %v784 = vsel %vm270, %v779, %v783
    %s785 = scalar_lea.vmem %s2, 36
    %v786 = vld [vmem:[%s785] sm:$0xf]
    %v787 = vld [vmem:[%s785 + $0x4] sm:$0xf]
    %v788 = vld [vmem:[%s785 + $0x8] sm:$0xf]
    %v789 = vld [vmem:[%s785 + $0xc] sm:$0xf]
    %v790 = vld [vmem:[%s785 + $0x10] sm:$0xf]
    %v791 = vld [vmem:[%s785 + $0x14] sm:$0xf]
    %v792 = vld [vmem:[%s785 + $0x18] sm:$0xf]
    %v793 = vld [vmem:[%s785 + $0x1c] sm:$0xf]
    %v794 = vld [vmem:[%s785 + $0x20] sm:$0xf]
    %v795 = vunpack.c.l.b16 %v750
    %v796 = vunpack.c.l.b16 %v760
    %v797 = vunpack.c.l.b16 %v774
    %v798 = vunpack.c.l.b16 %v784
    %v799 = vpack.c.b16 %v796, %v795
    %v800 = vpack.c.b16 %v798, %v797
    %v810 = vunpack.c.l.b16 %v786
    %v811 = vunpack.c.l.b16 %v787
    %v812 = vunpack.c.l.b16 %v788
    %v813 = vunpack.c.l.b16 %v789
    %v814 = vunpack.c.l.b16 %v790
    %v815 = vunpack.c.l.b16 %v791
    %v816 = vunpack.c.l.b16 %v792
    %v817 = vunpack.c.l.b16 %v793
    %v818 = vunpack.c.l.b16 %v794
    %v819 = vpack.c.b16 %v811, %v810
    %v820 = vpack.c.b16 %v813, %v812
    %v821 = vpack.c.b16 %v815, %v814
    %v822 = vpack.c.b16 %v817, %v816
    %v823 = vpack.c.b16 %v818, %v818
    %v829 = vsel %vm362, %v799, 0
    %v832 = vsel %vm362, %v800, 0
    %v835 = vsel %vm369, %v823, 0
    %837 = vmatpush.bf16.msra.mxu0 0
    %838 = vmatpush.bf16.msra.mxu0 0
    %839 = vmatpush.bf16.msra.mxu0 0
    %840 = vmatpush.bf16.msra.mxu0 %v835
    %841 = vmatpush.bf16.msra.mxu0 %v822
    %842 = vmatpush.bf16.msra.mxu0 %v821
    %843 = vmatpush.bf16.msra.mxu0 %v820
    %844 = vmatpush.bf16.msra.mxu0 %v819
    %845 = vmatmul.bf16.gmra.mxu0 %v829
    %v846 = vpop.f32.mrf.mxu0
    %v847 = vadd.f32 0.0, %v846
    %v848 = vpop.f32.mrf.mxu0
    %v849 = vadd.f32 0.0, %v848
    %850 = vmatmul.bf16.gmra.mxu0 %v832
    %v851 = vpop.f32.mrf.mxu0
    %v852 = vadd.f32 0.0, %v851
    %v853 = vpop.f32.mrf.mxu0
    %v854 = vadd.f32 0.0, %v853
    %855 = vdwg.mxu0
    %v860 = vunpack.c.l.b16 %v722
    %v861 = vunpack.c.l.b16 %v723
    %v862 = vunpack.c.l.b16 %v724
    %v863 = vunpack.c.l.b16 %v725
    %v864 = vpack.c.b16 %v861, %v860
    %v865 = vpack.c.b16 %v863, %v862
    %v875 = vunpack.c.l.b16 %v726
    %v876 = vunpack.c.l.b16 %v727
    %v877 = vunpack.c.l.b16 %v728
    %v878 = vunpack.c.l.b16 %v729
    %v879 = vunpack.c.l.b16 %v730
    %v880 = vunpack.c.l.b16 %v731
    %v881 = vunpack.c.l.b16 %v732
    %v882 = vunpack.c.l.b16 %v733
    %v883 = vunpack.c.l.b16 %v734
    %v884 = vpack.c.b16 %v876, %v875
    %v885 = vpack.c.b16 %v878, %v877
    %v886 = vpack.c.b16 %v880, %v879
    %v887 = vpack.c.b16 %v882, %v881
    %v888 = vpack.c.b16 %v883, %v883
    %v894 = vsel %vm362, %v864, 0
    %v897 = vsel %vm362, %v865, 0
    %v900 = vsel %vm369, %v888, 0
    %902 = vmatpush.bf16.msra.mxu0 0
    %903 = vmatpush.bf16.msra.mxu0 0
    %904 = vmatpush.bf16.msra.mxu0 0
    %905 = vmatpush.bf16.msra.mxu0 %v900
    %906 = vmatpush.bf16.msra.mxu0 %v887
    %907 = vmatpush.bf16.msra.mxu0 %v886
    %908 = vmatpush.bf16.msra.mxu0 %v885
    %909 = vmatpush.bf16.msra.mxu0 %v884
    %910 = vmatmul.bf16.gmra.mxu0 %v894
    %v911 = vpop.f32.mrf.mxu0
    %v912 = vadd.f32 %v847, %v911
    %v913 = vpop.f32.mrf.mxu0
    %v914 = vadd.f32 %v849, %v913
    %915 = vmatmul.bf16.gmra.mxu0 %v897
    %v916 = vpop.f32.mrf.mxu0
    %v917 = vadd.f32 %v852, %v916
    %v918 = vpop.f32.mrf.mxu0
    %v919 = vadd.f32 %v854, %v918
    %920 = vdwg.mxu0
    %v921 = vld [vmem:[#allocation2] sm:$0xe]
    %v922 = vld [vmem:[#allocation2 + $0xc] sm:$0xe]
    %v927 = vrot.slane %v921, 5
    %v928 = vrot.slane %v927, 4
    %v929 = vrot.slane %v723, 5
    %v930 = vsel %vm465, %v928, %v929
    %v931 = vrot.slane %v929, 4
    %v932 = vrot.slane %v735, 5
    %v933 = vsel %vm465, %v931, %v932
    %v934 = vrot.slane %v922, 5
    %v935 = vrot.slane %v934, 4
    %v936 = vrot.slane %v725, 5
    %v937 = vsel %vm465, %v935, %v936
    %v938 = vrot.slane %v936, 4
    %v939 = vrot.slane %v736, 5
    %v940 = vsel %vm465, %v938, %v939
    %s941 = scalar_lea.vmem %s2, 72
    %v942 = vld [vmem:[%s941] sm:$0xf]
    %v943 = vld [vmem:[%s941 + $0x4] sm:$0xf]
    %v944 = vld [vmem:[%s941 + $0x8] sm:$0xf]
    %v945 = vld [vmem:[%s941 + $0xc] sm:$0xf]
    %v946 = vld [vmem:[%s941 + $0x10] sm:$0xf]
    %v947 = vld [vmem:[%s941 + $0x14] sm:$0xf]
    %v948 = vld [vmem:[%s941 + $0x18] sm:$0xf]
    %v949 = vld [vmem:[%s941 + $0x1c] sm:$0xf]
    %v950 = vld [vmem:[%s941 + $0x20] sm:$0xf]
    %v951 = vunpack.c.l.b16 %v930
    %v952 = vunpack.c.l.b16 %v933
    %v953 = vunpack.c.l.b16 %v937
    %v954 = vunpack.c.l.b16 %v940
    %v955 = vpack.c.b16 %v952, %v951
    %v956 = vpack.c.b16 %v954, %v953
    %v966 = vunpack.c.l.b16 %v942
    %v967 = vunpack.c.l.b16 %v943
    %v968 = vunpack.c.l.b16 %v944
    %v969 = vunpack.c.l.b16 %v945
    %v970 = vunpack.c.l.b16 %v946
    %v971 = vunpack.c.l.b16 %v947
    %v972 = vunpack.c.l.b16 %v948
    %v973 = vunpack.c.l.b16 %v949
    %v974 = vunpack.c.l.b16 %v950
    %v975 = vpack.c.b16 %v967, %v966
    %v976 = vpack.c.b16 %v969, %v968
    %v977 = vpack.c.b16 %v971, %v970
    %v978 = vpack.c.b16 %v973, %v972
    %v979 = vpack.c.b16 %v974, %v974
    %v985 = vsel %vm362, %v955, 0
    %v988 = vsel %vm362, %v956, 0
    %v991 = vsel %vm369, %v979, 0
    %993 = vmatpush.bf16.msra.mxu0 0
    %994 = vmatpush.bf16.msra.mxu0 0
    %995 = vmatpush.bf16.msra.mxu0 0
    %996 = vmatpush.bf16.msra.mxu0 %v991
    %997 = vmatpush.bf16.msra.mxu0 %v978
    %998 = vmatpush.bf16.msra.mxu0 %v977
    %999 = vmatpush.bf16.msra.mxu0 %v976
    %1000 = vmatpush.bf16.msra.mxu0 %v975
    %1001 = vmatmul.bf16.gmra.mxu0 %v985
    %v1002 = vpop.f32.mrf.mxu0
    %v1003 = vadd.f32 0.0, %v1002
    %v1004 = vpop.f32.mrf.mxu0
    %v1005 = vadd.f32 0.0, %v1004
    %1006 = vmatmul.bf16.gmra.mxu0 %v988
    %v1007 = vpop.f32.mrf.mxu0
    %v1008 = vadd.f32 0.0, %v1007
    %v1009 = vpop.f32.mrf.mxu0
    %v1010 = vadd.f32 0.0, %v1009
    %1011 = vdwg.mxu0
    %v1012 = vadd.f32 %v912, %v1003
    %v1013 = vadd.f32 %v914, %v1005
    %v1014 = vadd.f32 %v917, %v1008
    %v1015 = vadd.f32 %v919, %v1010
    %v1016 = vsel %vm555, %v1012, 0.0
    %v1017 = vsel %vm555, %v1013, 0.0
    %v1018 = vadd.f32 %v1016, %v1017
    %v1019 = vsel %vm555, %v1014, 0.0
    %v1020 = vadd.f32 %v1018, %v1019
    %v1021 = vsel %vm555, %v1015, 0.0
    %v1022 = vadd.f32 %v1020, %v1021
    %v1023 = vrot.slane %v1022, 4
    %v1024 = vadd.f32 %v1022, %v1023
    %v1025 = vrot.slane %v1024, 2
    %v1026 = vadd.f32 %v1024, %v1025
    %v1027 = vrot.slane %v1026, 1
    %v1028 = vadd.f32 %v1026, %v1027
    %v1029 = vmul.f32 %v1012, %v1012
    %v1030 = vmul.f32 %v1013, %v1013
    %v1031 = vmul.f32 %v1014, %v1014
    %v1032 = vmul.f32 %v1015, %v1015
    %v1033 = vsel %vm555, %v1029, 0.0
    %v1034 = vsel %vm555, %v1030, 0.0
    %v1035 = vadd.f32 %v1033, %v1034
    %v1036 = vsel %vm555, %v1031, 0.0
    %v1037 = vadd.f32 %v1035, %v1036
    %v1038 = vsel %vm555, %v1032, 0.0
    %v1039 = vadd.f32 %v1037, %v1038
    %v1040 = vrot.slane %v1039, 4
    %v1041 = vadd.f32 %v1039, %v1040
    %v1042 = vrot.slane %v1041, 2
    %v1043 = vadd.f32 %v1041, %v1042
    %v1044 = vrot.slane %v1043, 1
    %v1045 = vadd.f32 %v1043, %v1044
    %v1046 = vsel %vm586, %v1028, %v1045
    %v1048 = vsel %vm555, %v1046, 0
    %1050 = vmatpush.msra.mxu0 0.0
    %1051 = vmatpush.msra.mxu0 0.0
    %1052 = vmatpush.msra.mxu0 0.0
    %1053 = vmatpush.msra.mxu0 0.0
    %1054 = vmatpush.msra.mxu0 0.0
    %1055 = vmatpush.msra.mxu0 0.0
    %1056 = vmatpush.msra.mxu0 0.0
    %1057 = vmatpush.msra.mxu0 0.0
    %1058 = vmatpush.msra.mxu0 %v161
    %1059 = vmatpush.msra.mxu0 %v160
    %1060 = vmatpush.msra.mxu0 %v159
    %1061 = vmatpush.msra.mxu0 %v158
    %1062 = vmatpush.msra.mxu0 %v157
    %1063 = vmatpush.msra.mxu0 %v156
    %1064 = vmatpush.msra.mxu0 %v155
    %1065 = vmatpush.msra.mxu0 %v154
    %1066 = vmatmul.f32.gmra.mxu0 %v1048
    %v1067 = vpop.f32.mrf.mxu0
    %v1068 = vadd.f32 0.0, %v1067
    %1069 = vdwg.mxu0
    %v1070 = vmul.f32 %v1068, 0.001953125
    %v1071 = vmul.f32 %v1070, %v1070
    %v1073 = vrot.slane %v1071, 7
    %v1075 = vsub.f32 %v1070, %v1073
    %v1076 = vld [vmem:[%s3 + $0x2] sm:$0x1]
    %v1077 = vadd.f32 %v1075, 1e-05
    %v1078 = vrsqrt.pop %v1077
    %v1079 = vmul.f32 %v1078, %v1077
    %v1080 = vmul.f32 %v1079, %v1078
    %v1081 = vmul.f32 0.5, %v1080
    %v1082 = vsub.f32 1.5, %v1081
    %v1083 = vmul.f32 %v1078, %v1082
    %vm1084 = vweird.f32 %v1077
    %vm1085 = vweird.f32 %v1078
    %vm1086 = vmor %vm1084, %vm1085
    %v1087 = vsel %vm1086, %v1078, %v1083
    %v1089 = vrot.slane %v1087, 1
    %v1091 = vmul.f32 %v1076, %v1089
    %v1092 = vperm.slane %v1070, 0
    %v1093 = vsub.f32 %v1012, %v1092
    %v1094 = vsub.f32 %v1013, %v1092
    %v1095 = vsub.f32 %v1014, %v1092
    %v1096 = vsub.f32 %v1015, %v1092
    %v1097 = vperm.slane %v1091, 0
    %v1098 = vmul.f32 %v1093, %v1097
    %v1099 = vmul.f32 %v1094, %v1097
    %v1100 = vmul.f32 %v1095, %v1097
    %v1101 = vmul.f32 %v1096, %v1097
    %v1102 = vld [vmem:[%s3 + $0x3] sm:$0x1]
    %v1103 = vperm.slane %v1102, 0
    %v1104 = vadd.f32 %v1098, %v1103
    %v1105 = vadd.f32 %v1099, %v1103
    %v1106 = vadd.f32 %v1100, %v1103
    %v1107 = vadd.f32 %v1101, %v1103
    %v1108 = vld [vmem:[%s0] sm:$0xff]
    %v1109 = vld [vmem:[%s0 + $0x8] sm:$0xff]
    %v1110 = vld [vmem:[%s0 + $0x10] sm:$0xff]
    %v1111 = vld [vmem:[%s0 + $0x18] sm:$0xff]
    %v1112 = vadd.f32 %v1104, %v1108
    %v1113 = vadd.f32 %v1105, %v1109
    %v1114 = vadd.f32 %v1106, %v1110
    %v1115 = vadd.f32 %v1107, %v1111
    %v1116 = vmax.f32 %v1112, 0.0
    %v1117 = vmax.f32 %v1113, 0.0
    %v1118 = vmax.f32 %v1114, 0.0
    %v1119 = vmax.f32 %v1115, 0.0
    %1120 = vst.msk [vmem:[#allocation3] sm:$0xff] %vm555, %v1116
    %1121 = vst.msk [vmem:[#allocation3 + $0x8] sm:$0xff] %vm555, %v1117
    %1122 = vst.msk [vmem:[#allocation3 + $0x10] sm:$0xff] %vm555, %v1118
    %1123 = vst.msk [vmem:[#allocation3 + $0x18] sm:$0xff] %vm555, %v1119
    // Predicated region
    $region18: #{tpu_custom_call.1} parent=1 // pred_check
      _
    $region19: #{tpu_custom_call.1} parent=1 // pred_check_branch
      %1125 = sbr.rel (0) target = $region21
    $region20: #{tpu_custom_call.1} parent=1 // pred_region
      %1127 = vsyncadd [#allocation4], 0
      %s1128 = sshll.u32 [#allocation3], 4
      %s1129 = int_to_ptr.vmem [resolvable:$true] %s1128
      %s1130 = sshll.u32 %s4, 4
      %s1131 = int_to_ptr.hbm [resolvable:$true] %s1130
      %1136 = dma.vmem_to_hbm [thread:$0]  %s1129, 512, %s1131, [#allocation4], 128, 128, 8
    $region21: #{tpu_custom_call.1} parent=1 // pred_fallthru
      _
    // Predicated region
    $region22: #{tpu_custom_call.1} parent=1 // pred_check
      _
    $region23: #{tpu_custom_call.1} parent=1 // pred_check_branch
      %1138 = sbr.rel (0) target = $region25
    $region24: #{tpu_custom_call.1} parent=1 // pred_region
      %1140 = dma.done [#allocation4], 512
    $region25: #{tpu_custom_call.1} parent=1 // pred_fallthru
      _
    %1141 = vsyncpa [#allocation4], 1

</llo_original>
